<compile_context>
chip_gen: v7x
topology: tpu7x:2x2x1
jax: 0.10.0
libtpu: 0.0.40
codegen_flags: <defaults>
</compile_context>

<pallas_src>
import functools

import jax
import jax.numpy as jnp
from jax.experimental import pallas as pl
from jax.experimental.pallas import tpu as pltpu

EPS = 1e-5


def _linear_block_kernel(x_ref, w_ref, gb_ref, o_ref, acc_ref, *, compute_dtype):
    """Produces one (B, tn) output tile; K (in_features) is the last, reduction axis."""
    k = pl.program_id(1)

    @pl.when(k == 0)
    def _():
        acc_ref[...] = jnp.zeros_like(acc_ref)

    # Linear: accumulate x @ W^T on the MXU with f32 accumulation.
    # Operands cast to bf16 for full MXU rate; no transposed copy of W needed.
    xb = x_ref[...].astype(compute_dtype)          # (B, tk)
    wb = w_ref[...].astype(compute_dtype)          # (tn, tk)  PyTorch layout
    acc_ref[...] += jax.lax.dot_general(
        xb, wb,
        dimension_numbers=(((1,), (1,)), ((), ())),  # contract in_features
        preferred_element_type=jnp.float32)

    @pl.when(k == pl.num_programs(1) - 1)
    def _():
        y = acc_ref[...]                                            # (B, tn) f32
        inv_b = 1.0 / y.shape[0]
        # One-pass BatchNorm1d training statistics over the batch axis.
        mean = jnp.sum(y, axis=0, keepdims=True) * inv_b            # (1, tn)
        mean_sq = jnp.sum(y * y, axis=0, keepdims=True) * inv_b     # (1, tn)
        var = mean_sq - mean * mean                                 # biased var
        y = (y - mean) * jax.lax.rsqrt(var + EPS)
        gamma = gb_ref[0:1, :]
        beta = gb_ref[1:2, :]
        y = y * gamma + beta
        o_ref[...] = jnp.maximum(y, 0.0).astype(o_ref.dtype)        # ReLU


def _pick_tile(dim, target, align=128):
    """Largest multiple of `align` <= target that divides `dim`; else full dim."""
    if dim <= target:
        return dim
    t = (min(target, dim) // align) * align
    while t >= align:
        if dim % t == 0:
            return t
        t -= align
    return dim


def linear_block(x, w, gamma, beta, b=None, *,
                 compute_dtype=jnp.bfloat16, tn_target=512, tk_target=512):
    """Fused Linear -> BatchNorm1d(training stats) -> ReLU.

    x:     (B, in_f)   f32
    w:     (out_f, in_f)  PyTorch nn.Linear layout (NOT pre-transposed)
    gamma: (out_f,)    BN weight
    beta:  (out_f,)    BN bias
    b:     optional (out_f,) Linear bias — ignored: training-mode BatchNorm's
           batch-mean subtraction cancels a per-feature bias exactly.
    """
    del b  # mathematically cancelled by the batch-mean subtraction
    B, in_f = x.shape
    out_f = w.shape[0]

    tn = _pick_tile(out_f, tn_target)
    tk = _pick_tile(in_f, tk_target)
    grid = (out_f // tn, in_f // tk)   # N (parallel) first, K (reduction) last

    # Pack the two (out_f,) BN affine vectors into one (2, out_f) row slab so
    # the pipeline issues a single broadcast DMA per feature tile.  (In a real
    # model this packing would be done once at parameter-init time.)
    gb = jnp.stack([gamma, beta]).astype(jnp.float32)

    # TODO(synk): very large batches need a two-phase structure (phase 1
    # accumulates per-feature sum/sumsq across B tiles, phase 2 re-streams y to
    # normalize+ReLU); here the full batch stays resident per feature tile so
    # BatchNorm statistics remain exact.

    kernel = functools.partial(_linear_block_kernel, compute_dtype=compute_dtype)

    return pl.pallas_call(
        kernel,
        out_shape=jax.ShapeDtypeStruct((B, out_f), x.dtype),
        grid_spec=pltpu.PrefetchScalarGridSpec(
            num_scalar_prefetch=0,
            grid=grid,
            in_specs=[
                pl.BlockSpec((B, tk), lambda n, k: (0, k)),    # x
                pl.BlockSpec((tn, tk), lambda n, k: (n, k)),   # w (out_f, in_f)
                pl.BlockSpec((2, tn), lambda n, k: (0, n)),    # [gamma; beta]
            ],
            out_specs=pl.BlockSpec((B, tn), lambda n, k: (0, n)),
            scratch_shapes=[pltpu.VMEM((B, tn), jnp.float32)],  # f32 accumulator
        ),
        compiler_params=pltpu.CompilerParams(
            # Feature tiles are independent (BN stats are per-feature) -> parallel
            # (lets v7x's 2 TCs split them); in_features is the accumulator
            # reduction axis -> arbitrary, and last in the grid.
            dimension_semantics=("parallel", "arbitrary"),
            # Explicit scoped-VMEM budget; leaves headroom on v7x's 64 MiB VMEM.
            vmem_limit_bytes=48 * 1024 * 1024,
        ),
    )(x, w, gb)


def reference(x, w, b, gamma, beta, compute_dtype=jnp.bfloat16):
    """Pure-JAX reference with the same matmul precision (bf16 in, f32 acc)."""
    xb = x.astype(compute_dtype)
    wb = w.astype(compute_dtype)
    y = jnp.dot(xb, wb.T, preferred_element_type=jnp.float32) + b
    mean = jnp.mean(y, axis=0, keepdims=True)
    var = jnp.mean((y - mean) ** 2, axis=0, keepdims=True)
    y = (y - mean) * jax.lax.rsqrt(var + EPS)
    y = y * gamma + beta
    return jnp.maximum(y, 0.0)


if __name__ == "__main__":
    B, IN_F, OUT_F = 8, 32, 128
    key = jax.random.PRNGKey(0)
    kx, kw, kb, kg, kbe = jax.random.split(key, 5)

    x = jax.random.normal(kx, (B, IN_F), dtype=jnp.float32)

    # Deterministic PyTorch-like init: U(-1/sqrt(in_f), 1/sqrt(in_f))
    bound = 1.0 / (IN_F ** 0.5)
    w = jax.random.uniform(kw, (OUT_F, IN_F), jnp.float32, -bound, bound)
    b = jax.random.uniform(kb, (OUT_F,), jnp.float32, -bound, bound)
    # BatchNorm affine params (default init gamma=1, beta=0; perturb to exercise path)
    gamma = 1.0 + 0.1 * jax.random.normal(kg, (OUT_F,), jnp.float32)
    beta = 0.1 * jax.random.normal(kbe, (OUT_F,), jnp.float32)

    out = linear_block(x, w, gamma, beta, b)
    jax.block_until_ready(out)

    ref = reference(x, w, b, gamma, beta)
    assert out.shape == (B, OUT_F)
    assert jnp.allclose(out, ref, atol=1e-3, rtol=1e-3), "mismatch vs reference"

    # NOTE: at this toy shape the call is dominated by fixed per-call overhead;
    # the tiling pays off at production-sized in_f/out_f.
    print("KERNEL_OK")
</pallas_src>

<mosaic_0001>
module attributes {stable_mosaic.version = 11 : i64} {
  func.func @_linear_block_kernel(%arg0: i32, %arg1: i32, %arg2: memref<8x32xf32, #tpu.memory_space<vmem>>, %arg3: memref<128x32xf32, #tpu.memory_space<vmem>>, %arg4: memref<2x128xf32, #tpu.memory_space<vmem>>, %arg5: memref<8x128xf32, #tpu.memory_space<vmem>>, %arg6: memref<8x128xf32, #tpu.memory_space<vmem>>) attributes {dimension_semantics = [#tpu.dimension_semantics<parallel>, #tpu.dimension_semantics<arbitrary>], iteration_bounds = array<i64: 1, 1>, scalar_prefetch = 0 : i64, scratch_operands = 1 : i64, tpu.core_type = #tpu.core_type<tc>, window_params = [{transform_indices = @transform_0, window_bounds = array<i64: 8, 32>}, {transform_indices = @transform_1, window_bounds = array<i64: 128, 32>}, {transform_indices = @transform_2, window_bounds = array<i64: 2, 128>}, {transform_indices = @transform_3, window_bounds = array<i64: 8, 128>}]} {
    %c0_i32 = arith.constant 0 : i32
    %0 = arith.cmpi eq, %arg1, %c0_i32 : i32
    %1 = arith.extui %0 : i1 to i32
    %c0_i32_0 = arith.constant 0 : i32
    %2 = arith.cmpi ne, %1, %c0_i32_0 : i32
    scf.if %2 {
      %cst_10 = arith.constant 0.000000e+00 : f32
      %14 = vector.broadcast %cst_10 : f32 to vector<8x128xf32>
      %c0_11 = arith.constant 0 : index
      %c0_12 = arith.constant 0 : index
      %15 = vector.load %arg6[%c0_11, %c0_12] : memref<8x128xf32, #tpu.memory_space<vmem>>, vector<8x128xf32>
      tpu.vector_store %arg6[%c0_11, %c0_12], %14 {strides = array<i32>} : memref<8x128xf32, #tpu.memory_space<vmem>>, vector<8x128xf32>,
    } else {
    }
    %c0 = arith.constant 0 : index
    %c0_1 = arith.constant 0 : index
    %3 = vector.load %arg2[%c0, %c0_1] : memref<8x32xf32, #tpu.memory_space<vmem>>, vector<8x32xf32>
    %4 = arith.truncf %3 : vector<8x32xf32> to vector<8x32xbf16>
    %c0_2 = arith.constant 0 : index
    %c0_3 = arith.constant 0 : index
    %5 = vector.load %arg3[%c0_2, %c0_3] : memref<128x32xf32, #tpu.memory_space<vmem>>, vector<128x32xf32>
    %6 = arith.truncf %5 : vector<128x32xf32> to vector<128x32xbf16>
    %c0_4 = arith.constant 0 : index
    %c0_5 = arith.constant 0 : index
    %7 = vector.load %arg6[%c0_4, %c0_5] : memref<8x128xf32, #tpu.memory_space<vmem>>, vector<8x128xf32>
    %cst = arith.constant dense<0.000000e+00> : vector<8x128xf32>
    %8 = tpu.matmul %4, %6, %cst {dimension_numbers = #tpu.dot_dimension_numbers<[1], [1], [0], [0], [0, 0, 1, 0], [], []>} : vector<8x32xbf16>, vector<128x32xbf16>, vector<8x128xf32> -> vector<8x128xf32>
    %9 = arith.addf %7, %8 : vector<8x128xf32>
    %c0_6 = arith.constant 0 : index
    %c0_7 = arith.constant 0 : index
    %10 = vector.load %arg6[%c0_6, %c0_7] : memref<8x128xf32, #tpu.memory_space<vmem>>, vector<8x128xf32>
    tpu.vector_store %arg6[%c0_6, %c0_7], %9 {strides = array<i32>} : memref<8x128xf32, #tpu.memory_space<vmem>>, vector<8x128xf32>,
    %c0_i32_8 = arith.constant 0 : i32
    %11 = arith.cmpi eq, %arg1, %c0_i32_8 : i32
    %12 = arith.extui %11 : i1 to i32
    %c0_i32_9 = arith.constant 0 : i32
    %13 = arith.cmpi ne, %12, %c0_i32_9 : i32
    scf.if %13 {
      %c0_10 = arith.constant 0 : index
      %c0_11 = arith.constant 0 : index
      %14 = vector.load %arg6[%c0_10, %c0_11] : memref<8x128xf32, #tpu.memory_space<vmem>>, vector<8x128xf32>
      %cst_12 = arith.constant dense<0.000000e+00> : vector<128xf32>
      %15 = vector.multi_reduction <add>, %14, %cst_12 [0] : vector<8x128xf32> to vector<128xf32>
      %16 = vector.shape_cast %15 : vector<128xf32> to vector<1x128xf32>
      %cst_13 = arith.constant 1.250000e-01 : f32
      %17 = vector.broadcast %cst_13 : f32 to vector<1x128xf32>
      %18 = arith.mulf %16, %17 : vector<1x128xf32>
      %19 = arith.mulf %14, %14 : vector<8x128xf32>
      %cst_14 = arith.constant dense<0.000000e+00> : vector<128xf32>
      %20 = vector.multi_reduction <add>, %19, %cst_14 [0] : vector<8x128xf32> to vector<128xf32>
      %21 = vector.shape_cast %20 : vector<128xf32> to vector<1x128xf32>
      %cst_15 = arith.constant 1.250000e-01 : f32
      %22 = vector.broadcast %cst_15 : f32 to vector<1x128xf32>
      %23 = arith.mulf %21, %22 : vector<1x128xf32>
      %24 = arith.mulf %18, %18 : vector<1x128xf32>
      %25 = arith.subf %23, %24 : vector<1x128xf32>
      %26 = vector.broadcast %18 : vector<1x128xf32> to vector<8x128xf32>
      %27 = arith.subf %14, %26 : vector<8x128xf32>
      %cst_16 = arith.constant 9.99999974E-6 : f32
      %28 = vector.broadcast %cst_16 : f32 to vector<1x128xf32>
      %29 = arith.addf %25, %28 : vector<1x128xf32>
      %30 = math.rsqrt %29 : vector<1x128xf32>
      %31 = vector.broadcast %30 : vector<1x128xf32> to vector<8x128xf32>
      %32 = arith.mulf %27, %31 : vector<8x128xf32>
      %c0_17 = arith.constant 0 : index
      %c0_18 = arith.constant 0 : index
      %33 = vector.load %arg4[%c0_17, %c0_18] : memref<2x128xf32, #tpu.memory_space<vmem>>, vector<1x128xf32>
      %c1 = arith.constant 1 : index
      %c0_19 = arith.constant 0 : index
      %34 = vector.load %arg4[%c1, %c0_19] : memref<2x128xf32, #tpu.memory_space<vmem>>, vector<1x128xf32>
      %35 = vector.broadcast %33 : vector<1x128xf32> to vector<8x128xf32>
      %36 = arith.mulf %32, %35 : vector<8x128xf32>
      %37 = vector.broadcast %34 : vector<1x128xf32> to vector<8x128xf32>
      %38 = arith.addf %36, %37 : vector<8x128xf32>
      %cst_20 = arith.constant 0.000000e+00 : f32
      %39 = vector.broadcast %cst_20 : f32 to vector<8x128xf32>
      %40 = arith.maximumf %38, %39 : vector<8x128xf32>
      %c0_21 = arith.constant 0 : index
      %c0_22 = arith.constant 0 : index
      %41 = vector.load %arg5[%c0_21, %c0_22] : memref<8x128xf32, #tpu.memory_space<vmem>>, vector<8x128xf32>
      tpu.vector_store %arg5[%c0_21, %c0_22], %40 {strides = array<i32>} : memref<8x128xf32, #tpu.memory_space<vmem>>, vector<8x128xf32>,
    } else {
    }
    return
  }
  func.func @transform_0(%arg0: i32, %arg1: i32) -> (i32, i32) {
    %c0_i32 = arith.constant 0 : i32
    %c0_i32_0 = arith.constant 0 : i32
    return %c0_i32, %arg1 : i32, i32
  }
  func.func @transform_1(%arg0: i32, %arg1: i32) -> (i32, i32) {
    %c0_i32 = arith.constant 0 : i32
    return %arg0, %arg1 : i32, i32
  }
  func.func @transform_2(%arg0: i32, %arg1: i32) -> (i32, i32) {
    %c0_i32 = arith.constant 0 : i32
    %c0_i32_0 = arith.constant 0 : i32
    return %c0_i32, %arg0 : i32, i32
  }
  func.func @transform_3(%arg0: i32, %arg1: i32) -> (i32, i32) {
    %c0_i32 = arith.constant 0 : i32
    %c0_i32_0 = arith.constant 0 : i32
    return %c0_i32, %arg0 : i32, i32
  }
}

</mosaic_0001>

<llo_original>
// kernel: tpu_custom_call.1
$region0: #{tpu_custom_call.1}
  #allocation0 [shape = 'u32[]', space=smem, size = 0x4, offset = 0x4, fixed_abs, tag = 'smem constant byte address 0x4 - core index']
  #allocation1 [shape = 'u32[144,128]{1,0:T(1,128)}', space=vmem, size = 0x12000, scoped, tag = 'internal scratch']
  #allocation2 [shape = 'f32[8,128]{1,0:T(8,128)}', space=vmem, size = 0x1000, scoped, tag = 'scratch operand']
  %s0 = inlined_call_operand.vmem [shape: f32[8,32], index: 0, kind: input, shape index: {}]
  %s1 = inlined_call_operand.vmem [shape: f32[128,32], index: 1, kind: input, shape index: {}]
  %s2 = inlined_call_operand.vmem [shape: f32[2,128], index: 2, kind: input, shape index: {}]
  %s3 = inlined_call_operand.hbm [shape: f32[8,128], index: 3, kind: output, shape index: {}]
  %s4 = sld [smem:[#allocation0]]
  $region30: #{tpu_custom_call.1} parent=0
    _
  %s6 = ssub.s32 1, %s4
  %s7 = scalar_select 0, %s6, %s4
  $region1: #{tpu_custom_call.1} parent=0
    #allocation3 [shape = 'u8[4096]{0}', space=vmem, size = 0x1000, scoped, tag = 'output window, operand 0, single buffered']
    #allocation4 [shape = 's32[1]{0}', space=sflag, size = 0x4, scoped, tag = 'scoped memory for tpu_custom_call.1']
    %8 = vsyncpa [#allocation4], 0
    // Predicated region
    $region2: #{tpu_custom_call.1} parent=1 // pred_check
      _
    $region3: #{tpu_custom_call.1} parent=1 // pred_check_branch
      %10 = sbr.rel (0) target = $region5
    $region4: #{tpu_custom_call.1} parent=1 // pred_region
      _
    $region5: #{tpu_custom_call.1} parent=1 // pred_fallthru
      _
    // Predicated region
    $region6: #{tpu_custom_call.1} parent=1 // pred_check
      _
    $region7: #{tpu_custom_call.1} parent=1 // pred_check_branch
      %12 = sbr.rel (0) target = $region9
    $region8: #{tpu_custom_call.1} parent=1 // pred_region
      _
    $region9: #{tpu_custom_call.1} parent=1 // pred_fallthru
      _
    // Predicated region
    $region10: #{tpu_custom_call.1} parent=1 // pred_check
      _
    $region11: #{tpu_custom_call.1} parent=1 // pred_check_branch
      %14 = sbr.rel (0) target = $region13
    $region12: #{tpu_custom_call.1} parent=1 // pred_region
      _
    $region13: #{tpu_custom_call.1} parent=1 // pred_fallthru
      _
    %p16 = scmp.eq.s32.totalorder 0, 0
    // Predicated region
    $region14: #{tpu_custom_call.1} parent=1 // pred_check
      %p17 = pneg %p16
    $region15: #{tpu_custom_call.1} parent=1 // pred_check_branch
      %19 = sbr.rel (%p17) target = $region17
    $region16: #{tpu_custom_call.1} parent=1 // pred_region
      %20 = vst [vmem:[#allocation2] sm:$0xff] 0.0
    $region17: #{tpu_custom_call.1} parent=1 // pred_fallthru
      _
    %v21 = vld [vmem:[%s0] sm:$0xff]
    %v22 = vpack.c.bf16 %v21, %v21
    %v23 = vld [vmem:[%s1] sm:$0xff]
    %v24 = vld [vmem:[%s1 + $0x8] sm:$0xff]
    %v25 = vld [vmem:[%s1 + $0x10] sm:$0xff]
    %v26 = vld [vmem:[%s1 + $0x18] sm:$0xff]
    %v27 = vld [vmem:[%s1 + $0x20] sm:$0xff]
    %v28 = vld [vmem:[%s1 + $0x28] sm:$0xff]
    %v29 = vld [vmem:[%s1 + $0x30] sm:$0xff]
    %v30 = vld [vmem:[%s1 + $0x38] sm:$0xff]
    %v31 = vld [vmem:[%s1 + $0x40] sm:$0xff]
    %v32 = vld [vmem:[%s1 + $0x48] sm:$0xff]
    %v33 = vld [vmem:[%s1 + $0x50] sm:$0xff]
    %v34 = vld [vmem:[%s1 + $0x58] sm:$0xff]
    %v35 = vld [vmem:[%s1 + $0x60] sm:$0xff]
    %v36 = vld [vmem:[%s1 + $0x68] sm:$0xff]
    %v37 = vld [vmem:[%s1 + $0x70] sm:$0xff]
    %v38 = vld [vmem:[%s1 + $0x78] sm:$0xff]
    %v39 = vpack.c.bf16 %v24, %v23
    %v40 = vpack.c.bf16 %v26, %v25
    %v41 = vpack.c.bf16 %v28, %v27
    %v42 = vpack.c.bf16 %v30, %v29
    %v43 = vpack.c.bf16 %v32, %v31
    %v44 = vpack.c.bf16 %v34, %v33
    %v45 = vpack.c.bf16 %v36, %v35
    %v46 = vpack.c.bf16 %v38, %v37
    %v47 = vld [vmem:[#allocation2] sm:$0xff]
    %vm48 = vcmask 261120
    %v50 = vsel %vm48, %v22, 0
    %v53 = vsel %vm48, %v39, 0
    %v56 = vsel %vm48, %v40, 0
    %v59 = vsel %vm48, %v41, 0
    %v62 = vsel %vm48, %v42, 0
    %v65 = vsel %vm48, %v43, 0
    %v68 = vsel %vm48, %v44, 0
    %v71 = vsel %vm48, %v45, 0
    %v74 = vsel %vm48, %v46, 0
    %76 = vmatprep.subr.bf16.mxu0 0
    %77 = vmatpush1.bf16.xpose.msra.mxu0 %v53
    %78 = vmatprep.subr.bf16.mxu0 0
    %79 = vmatpush1.bf16.xpose.msra.mxu0 %v56
    %80 = vmatprep.subr.bf16.mxu0 0
    %81 = vmatpush1.bf16.xpose.msra.mxu0 %v59
    %82 = vmatprep.subr.bf16.mxu0 0
    %83 = vmatpush1.bf16.xpose.msra.mxu0 %v62
    %84 = vmatprep.subr.bf16.mxu0 0
    %85 = vmatpush1.bf16.xpose.msra.mxu0 %v65
    %86 = vmatprep.subr.bf16.mxu0 0
    %87 = vmatpush1.bf16.xpose.msra.mxu0 %v68
    %88 = vmatprep.subr.bf16.mxu0 0
    %89 = vmatpush1.bf16.xpose.msra.mxu0 %v71
    %90 = vmatprep.subr.bf16.mxu0 0
    %91 = vmatpush1.bf16.xpose.msra.mxu0 %v74
    %92 = vmatprep.subr.bf16.mxu0 0
    %93 = vmatpush1.bf16.xpose.msra.mxu0 0
    %94 = vmatprep.subr.bf16.mxu0 0
    %95 = vmatpush1.bf16.xpose.msra.mxu0 0
    %96 = vmatprep.subr.bf16.mxu0 0
    %97 = vmatpush1.bf16.xpose.msra.mxu0 0
    %98 = vmatprep.subr.bf16.mxu0 0
    %99 = vmatpush1.bf16.xpose.msra.mxu0 0
    %100 = vmatprep.subr.bf16.mxu0 0
    %101 = vmatpush1.bf16.xpose.msra.mxu0 0
    %102 = vmatprep.subr.bf16.mxu0 0
    %103 = vmatpush1.bf16.xpose.msra.mxu0 0
    %104 = vmatprep.subr.bf16.mxu0 0
    %105 = vmatpush1.bf16.xpose.msra.mxu0 0
    %106 = vmatprep.subr.bf16.mxu0 0
    %107 = vmatpush1.bf16.xpose.msra.mxu0 0
    %108 = vmatprep.mubr.bf16.mxu0 0
    %109 = vmatmul.mubr.bf16.gmra.mrb[0].mxu0 %v50
    %v110 = vpop.f32.mrb[0].mxu0
    %v111 = vadd.f32 0.0, %v110
    %v112 = vpop.f32.mrb[0].mxu0
    %v113 = vpop.f32.mrb[0].mxu0
    %v114 = vpop.f32.mrb[0].mxu0
    %115 = vdwg.mxu0
    %v116 = vadd.f32 %v47, %v111
    %117 = vst [vmem:[#allocation2] sm:$0xff] %v116
    // Predicated region
    $region18: #{tpu_custom_call.1} parent=1 // pred_check
      %p118 = pneg %p16
    $region19: #{tpu_custom_call.1} parent=1 // pred_check_branch
      %120 = sbr.rel (%p118) target = $region21
    $region20: #{tpu_custom_call.1} parent=1 // pred_region
      %v121 = vld [vmem:[#allocation2] sm:$0xff]
      %v122 = vrot.slane %v121, 4
      %v123 = vadd.f32 %v121, %v122
      %v124 = vrot.slane %v123, 2
      %v125 = vadd.f32 %v123, %v124
      %v126 = vrot.slane %v125, 1
      %v127 = vadd.f32 %v125, %v126
      %v128 = vmul.f32 %v127, 0.125
      %v129 = vmul.f32 %v121, %v121
      %v130 = vrot.slane %v129, 4
      %v131 = vadd.f32 %v129, %v130
      %v132 = vrot.slane %v131, 2
      %v133 = vadd.f32 %v131, %v132
      %v134 = vrot.slane %v133, 1
      %v135 = vadd.f32 %v133, %v134
      %v136 = vmul.f32 %v135, 0.125
      %v137 = vmul.f32 %v128, %v128
      %v138 = vsub.f32 %v136, %v137
      %v139 = vsub.f32 %v121, %v128
      %v140 = vadd.f32 %v138, 1e-05
      %v141 = vrsqrt.pop %v140
      %v142 = vmul.f32 %v139, %v141
      %v143 = vld [vmem:[%s2] sm:$0x1]
      %v144 = vld [vmem:[%s2 + $0x1] sm:$0x1]
      %v145 = vlaneseq
      %v146 = vshrl.u32 %v145, 7
      %v147 = vsub.s32 0, %v146
      %v148 = vrot.slane %v143, %v147
      %v149 = vmul.f32 %v142, %v148
      %v150 = vlaneseq
      %v151 = vshrl.u32 %v150, 7
      %v152 = vsub.s32 0, %v151
      %v153 = vrot.slane %v144, %v152
      %v154 = vadd.f32 %v149, %v153
      %v155 = vmax.f32 %v154, 0.0
      %156 = vst [vmem:[#allocation3] sm:$0xff] %v155
    $region21: #{tpu_custom_call.1} parent=1 // pred_fallthru
      _
    // Predicated region
    $region22: #{tpu_custom_call.1} parent=1 // pred_check
      _
    $region23: #{tpu_custom_call.1} parent=1 // pred_check_branch
      %158 = sbr.rel (0) target = $region25
    $region24: #{tpu_custom_call.1} parent=1 // pred_region
      %s160 = ssub.s32 128, 128
      %161 = vsyncadd [#allocation4], %s160
      %s163 = sshll.u32 [#allocation3], 4
      %s164 = int_to_ptr.vmem [resolvable:$true] %s163
      %166 = dma.vmem_to_hbm [thread:$0]  %s164, 128, %s3, [#allocation4]
    $region25: #{tpu_custom_call.1} parent=1 // pred_fallthru
      _
    // Predicated region
    $region26: #{tpu_custom_call.1} parent=1 // pred_check
      _
    $region27: #{tpu_custom_call.1} parent=1 // pred_check_branch
      %168 = sbr.rel (0) target = $region29
    $region28: #{tpu_custom_call.1} parent=1 // pred_region
      %169 = dma.done [#allocation4], 128
    $region29: #{tpu_custom_call.1} parent=1 // pred_fallthru
      _
    %170 = vsyncpa [#allocation4], 1

</llo_original>
